<compile_context>
chip_gen: v5e
topology: v5e:2x2
jax: 0.10.0
libtpu: 0.0.40
codegen_flags: <defaults>
</compile_context>

<pallas_src>
import jax
import jax.numpy as jnp
from jax.experimental import pallas as pl
from jax.experimental.pallas import tpu as pltpu


_LANES = 1024                          # lane-dense last dim: large multiple of 128
_TARGET_BLOCK_BYTES = 2 * 1024 * 1024  # ~2 MiB/block; 2x(in)+2x(out) double
                                       # buffers = 8 MiB, fits the scoped VMEM
                                       # default on v5e / v6e / v7x with headroom.


def _copy_kernel(x_ref, o_ref):
    # Pure passthrough of the VMEM tile.
    o_ref[...] = x_ref[...]


@jax.jit
def curve_block_forward(x: jax.Array) -> jax.Array:
    """Pallas implementation of CurveBlock.forward: identity."""
    orig_shape = x.shape
    total = x.size
    if total == 0:
        return x

    itemsize = x.dtype.itemsize
    # Sublane pack: 8 rows/vreg for 32-bit, 16 for bf16, 32 for int8/fp8.
    sub = 8 * max(1, 4 // itemsize)

    # Rows of the lane-dense (rows, _LANES) view, rounded up to the sublane pack.
    rows = pl.cdiv(total, _LANES)
    rows = pl.cdiv(rows, sub) * sub

    # Row tile sized by bytes (not a fixed row cap), multiple of the sublane pack.
    max_tile_rows = max(sub, (_TARGET_BLOCK_BYTES // (_LANES * itemsize)) // sub * sub)
    tile_rows = min(rows, max_tile_rows)

    # Even grid: pad rows up to a tile multiple. Never collapses to a single
    # whole-array block, so VMEM stays bounded and the pipeline stays multi-step.
    num_blocks = pl.cdiv(rows, tile_rows)
    rows = num_blocks * tile_rows
    padded_total = rows * _LANES

    flat = x.reshape(-1)
    if padded_total != total:
        flat = jnp.pad(flat, (0, padded_total - total))
    x2 = flat.reshape(rows, _LANES)

    out2 = pl.pallas_call(
        _copy_kernel,
        out_shape=jax.ShapeDtypeStruct((rows, _LANES), x.dtype),
        grid_spec=pltpu.PrefetchScalarGridSpec(
            num_scalar_prefetch=0,
            grid=(num_blocks,),
            in_specs=[pl.BlockSpec((tile_rows, _LANES), lambda i: (i, 0))],
            out_specs=pl.BlockSpec((tile_rows, _LANES), lambda i: (i, 0)),
        ),
        compiler_params=pltpu.CompilerParams(
            # Independent blocks: shardable across v7x's 2 TCs when grid > 1.
            dimension_semantics=("parallel",),
        ),
        # Let the output reuse the input HBM buffer (XLA inserts a copy only
        # if the operand is a live, non-donatable parameter).
        input_output_aliases={0: 0},
    )(x2)

    out_flat = out2.reshape(-1)
    if padded_total != total:
        out_flat = out_flat[:total]
    return out_flat.reshape(orig_shape)


if __name__ == "__main__":
    key = jax.random.PRNGKey(0)
    # NCHW input, small shapes consistent with a conv-style GAN block.
    x = jax.random.normal(key, (2, 4, 16, 16), dtype=jnp.float32)

    y = curve_block_forward(x)
    y = jax.block_until_ready(y)

    assert y.shape == x.shape
    assert y.dtype == x.dtype
    assert bool(jnp.all(y == x))

    print("KERNEL_OK")
</pallas_src>

<mosaic_0001>
module attributes {stable_mosaic.version = 11 : i64} {
  func.func @_copy_kernel(%arg0: i32, %arg1: memref<8x1024xf32, #tpu.memory_space<vmem>>, %arg2: memref<8x1024xf32, #tpu.memory_space<vmem>>) attributes {dimension_semantics = [#tpu.dimension_semantics<parallel>], iteration_bounds = array<i64: 1>, scalar_prefetch = 0 : i64, scratch_operands = 0 : i64, tpu.core_type = #tpu.core_type<tc>, window_params = [{transform_indices = @transform_0, window_bounds = array<i64: 8, 1024>}, {transform_indices = @transform_1, window_bounds = array<i64: 8, 1024>}]} {
    %c0 = arith.constant 0 : index
    %c0_0 = arith.constant 0 : index
    %0 = vector.load %arg1[%c0, %c0_0] : memref<8x1024xf32, #tpu.memory_space<vmem>>, vector<8x1024xf32>
    %c0_1 = arith.constant 0 : index
    %c0_2 = arith.constant 0 : index
    %1 = vector.load %arg2[%c0_1, %c0_2] : memref<8x1024xf32, #tpu.memory_space<vmem>>, vector<8x1024xf32>
    tpu.vector_store %arg2[%c0_1, %c0_2], %0 {strides = array<i32>} : memref<8x1024xf32, #tpu.memory_space<vmem>>, vector<8x1024xf32>,
    return
  }
  func.func @transform_0(%arg0: i32) -> (i32, i32) {
    %c0_i32 = arith.constant 0 : i32
    %c0_i32_0 = arith.constant 0 : i32
    return %arg0, %c0_i32 : i32, i32
  }
  func.func @transform_1(%arg0: i32) -> (i32, i32) {
    %c0_i32 = arith.constant 0 : i32
    %c0_i32_0 = arith.constant 0 : i32
    return %arg0, %c0_i32 : i32, i32
  }
}

</mosaic_0001>

<llo_original>
// kernel: curve_block_forward.1
$region0: #{curve_block_forward.1}
  #allocation0 [shape = 'u32[]', space=smem, size = 0x4, offset = 0x4, fixed_abs, tag = 'smem constant byte address 0x4 - core index']
  #allocation1 [shape = 'u32[72,128]{1,0:T(1,128)}', space=vmem, size = 0x9000, scoped, tag = 'internal scratch']
  %s0 = inlined_call_operand.vmem [shape: f32[8,1024], index: 0, kind: input, shape index: {}, may-alias: {0,1}]
  %s1 = inlined_call_operand.vmem [shape: f32[8,1024], index: 1, kind: output, shape index: {}, may-alias: {0,1}]
  %s2 = sld [smem:[#allocation0]]
  $region14: #{curve_block_forward.1} parent=0
    _
  %s4 = ssub.s32 1, %s2
  %s5 = scalar_select 0, %s4, %s2
  // Predicated region
  $region2: #{curve_block_forward.1} parent=0 // pred_check
    _
  $region3: #{curve_block_forward.1} parent=0 // pred_check_branch
    %7 = sbr.rel (0) target = $region5
  $region4: #{curve_block_forward.1} parent=0 // pred_region
    _
  $region5: #{curve_block_forward.1} parent=0 // pred_fallthru
    _
  %v8 = vld [vmem:[%s0] sm:$0xff]
  %v9 = vld [vmem:[%s0 + $0x8] sm:$0xff]
  %v10 = vld [vmem:[%s0 + $0x10] sm:$0xff]
  %v11 = vld [vmem:[%s0 + $0x18] sm:$0xff]
  %v12 = vld [vmem:[%s0 + $0x20] sm:$0xff]
  %v13 = vld [vmem:[%s0 + $0x28] sm:$0xff]
  %v14 = vld [vmem:[%s0 + $0x30] sm:$0xff]
  %v15 = vld [vmem:[%s0 + $0x38] sm:$0xff]
  %16 = vst [vmem:[%s1] sm:$0xff] %v8
  %17 = vst [vmem:[%s1 + $0x8] sm:$0xff] %v9
  %18 = vst [vmem:[%s1 + $0x10] sm:$0xff] %v10
  %19 = vst [vmem:[%s1 + $0x18] sm:$0xff] %v11
  %20 = vst [vmem:[%s1 + $0x20] sm:$0xff] %v12
  %21 = vst [vmem:[%s1 + $0x28] sm:$0xff] %v13
  %22 = vst [vmem:[%s1 + $0x30] sm:$0xff] %v14
  %23 = vst [vmem:[%s1 + $0x38] sm:$0xff] %v15
  // Predicated region
  $region6: #{curve_block_forward.1} parent=0 // pred_check
    _
  $region7: #{curve_block_forward.1} parent=0 // pred_check_branch
    %25 = sbr.rel (0) target = $region9
  $region8: #{curve_block_forward.1} parent=0 // pred_region
    _
  $region9: #{curve_block_forward.1} parent=0 // pred_fallthru
    _
  // Predicated region
  $region10: #{curve_block_forward.1} parent=0 // pred_check
    _
  $region11: #{curve_block_forward.1} parent=0 // pred_check_branch
    %27 = sbr.rel (0) target = $region13
  $region12: #{curve_block_forward.1} parent=0 // pred_region
    _
  $region13: #{curve_block_forward.1} parent=0 // pred_fallthru
    _

</llo_original>
